<compile_context>
chip_gen: v5e
topology: v5e:2x2
jax: 0.10.0
libtpu: 0.0.40
codegen_flags: <defaults>
</compile_context>

<pallas_src>
import functools

import jax
import jax.numpy as jnp
from jax.experimental import pallas as pl
from jax.experimental.pallas import tpu as pltpu


_NUM_SPLITS = 2  # leading "parallel" grid axis (second TensorCore on v7x)


def _round_up(x, m):
    return (x + m - 1) // m * m


def focal_loss_kernel(logits_ref, targets_ref, out_ref, acc_ref, *,
                      alpha, gamma, n_total, tile_n, steps_half, needs_mask):
    # logits_ref : (tile_n, C) float   targets_ref: (tile_n, 1) int32
    # out_ref    : (8, 128) f32 VMEM block, one per "parallel" batch-half
    # acc_ref    : (1, 1)   f32 VMEM scratch (per-core running sum)
    c = pl.program_id(0)            # batch-half ("parallel")
    i = pl.program_id(1)            # reduction step within the half ("arbitrary")

    @pl.when(i == 0)
    def _init():
        acc_ref[...] = jnp.zeros_like(acc_ref)

    x = logits_ref[...].astype(jnp.float32)               # (tn, C) f32
    t = targets_ref[...]                                   # (tn, 1) i32
    n_classes = x.shape[-1]

    # x[target] via a lane-iota mask (no dynamic gather on TPU).
    class_ids = jax.lax.broadcasted_iota(jnp.int32, x.shape, 1)
    onehot = class_ids == t
    sel = jnp.sum(jnp.where(onehot, x, 0.0), axis=-1, keepdims=True)   # (tn, 1)

    # Numerically-stable softmax pieces: one exp pass over the tile.
    m = jnp.max(x, axis=-1, keepdims=True)                 # (tn, 1)   XLU
    e = jnp.exp(x - m)                                      # (tn, C)   EUP

    # sum_j exp(x_j - m) on the otherwise-idle MXU instead of the XLU.
    ones_cols = jnp.ones((n_classes, 8), jnp.float32)
    sumexp = jnp.dot(e, ones_cols,
                     preferred_element_type=jnp.float32,
                     precision=jax.lax.Precision.HIGHEST)[:, 0:1]      # (tn, 1)

    # per-sample cross entropy: ce = logsumexp(x) - x[target]
    ce = jnp.log(sumexp) + (m - sel)                        # (tn, 1)

    # pt = exp(-ce); 1 - pt via a near-free (tn,1) EUP exp (no masked XLU
    # reduce).  Cancellation at pt -> 1 is benign: focal factor -> 0 there.
    one_minus_pt = 1.0 - jnp.exp(-ce)                       # (tn, 1)

    # (1 - pt) ** gamma: integer gamma -> (gamma-1) extra multiplies (no
    # float pow, which would lower to exp(gamma*log(.)) on the EUP).
    g = float(gamma)
    if g == int(g) and 1 <= int(g) <= 16:
        mod = one_minus_pt
        for _ in range(int(g) - 1):
            mod = mod * one_minus_pt
        f = mod * ce
    elif g == 0.0:
        f = ce
    else:
        safe = jnp.maximum(one_minus_pt, jnp.finfo(jnp.float32).tiny)
        f = jnp.where(one_minus_pt > 0.0, safe ** g, 0.0) * ce

    # alpha is folded into the finalize scale; only accumulate sum(f) here.
    row_start = (c * steps_half + i) * tile_n               # global row of tile

    def _accumulate(values):
        acc_ref[...] += jnp.sum(values, axis=0, keepdims=True)

    if needs_mask:
        # Only tiles that overrun the true N pay for the (tn,1) mask column.
        @pl.when(row_start + tile_n <= n_total)
        def _full_tile():
            _accumulate(f)

        @pl.when(row_start + tile_n > n_total)
        def _ragged_tile():
            row = jax.lax.broadcasted_iota(jnp.int32, (tile_n, 1), 0) + row_start
            _accumulate(jnp.where(row < n_total, f, 0.0))
    else:
        _accumulate(f)

    @pl.when(i == pl.num_programs(1) - 1)
    def _finalize():
        scale = jnp.float32(alpha / n_total)                # mean over true N
        out_ref[...] = jnp.broadcast_to(acc_ref[...] * scale, out_ref.shape)


def focal_loss(logits, targets, alpha=1.0, gamma=2.0,
               tile_n=8192, vmem_limit_bytes=40 * 1024 * 1024):
    """logits: (N, C) float array; targets: (N,) int class indices.

    VMEM sizing (per double-buffered tile, both inputs lane-pad to 128 lanes):
      logits  (tn, C)  f32 -> tn * 512 B per buffer
      targets (tn, 1)  i32 -> tn * 512 B per buffer   (lane padding!)
      => pipeline buffers ~= tn * 2 KiB, plus ~2-3x tn*512 B of in-kernel
         f32 temporaries.  Default tn=8192 ~= 28-32 MiB, inside the 40 MiB
         scoped limit set below and within v7x's 64 MiB physical VMEM.
      v6e: tile_n=16384 with vmem_limit_bytes~=64-80 MiB is profitable.
      v5e: HBM-bound; keep 8192 and prefer bf16 logits (upcast is in-kernel).
    """
    N, C = logits.shape
    targets2d = targets.reshape(N, 1).astype(jnp.int32)

    # tile rows: always a multiple of 8 sublanes, never (much) larger than N
    tn = min(_round_up(int(tile_n), 8), _round_up(N, 8))
    nblocks = pl.cdiv(N, tn)                       # real (possibly ragged) blocks
    steps_half = pl.cdiv(nblocks, _NUM_SPLITS)     # reduction steps per batch-half
    grid = (_NUM_SPLITS, steps_half)
    needs_mask = (_NUM_SPLITS * steps_half * tn) != N

    def block_map(c, i):
        # Clamp so the DMA never targets a fully out-of-bounds block; any
        # duplicated tile is zeroed by the in-kernel row mask.
        return (jnp.minimum(c * steps_half + i, nblocks - 1), 0)

    kernel = functools.partial(
        focal_loss_kernel,
        alpha=float(alpha), gamma=float(gamma), n_total=int(N),
        tile_n=tn, steps_half=int(steps_half), needs_mask=bool(needs_mask))

    out = pl.pallas_call(
        kernel,
        out_shape=jax.ShapeDtypeStruct((_NUM_SPLITS * 8, 128), jnp.float32),
        grid=grid,
        in_specs=[
            pl.BlockSpec((tn, C), block_map),        # logits tile
            pl.BlockSpec((tn, 1), block_map),        # targets tile
        ],
        # one lane-dense (8,128) partial-sum block per batch-half
        out_specs=pl.BlockSpec((8, 128), lambda c, i: (c, 0)),
        scratch_shapes=[pltpu.VMEM((1, 1), jnp.float32)],
        compiler_params=pltpu.CompilerParams(
            dimension_semantics=("parallel", "arbitrary"),
            vmem_limit_bytes=int(vmem_limit_bytes)),
    )(logits, targets2d)

    # element (0,0) of each half's block holds that half's alpha*sum/N
    return jnp.sum(out[::8, 0])


def focal_loss_ref(logits, targets, alpha=1.0, gamma=2.0):
    # pure-JAX reference for sanity checking
    logp = jax.nn.log_softmax(logits.astype(jnp.float32), axis=-1)
    ce = -jnp.take_along_axis(logp, targets[:, None].astype(jnp.int32), axis=-1)[:, 0]
    pt = jnp.exp(-ce)
    return jnp.mean(alpha * (1.0 - pt) ** gamma * ce)


if __name__ == "__main__":
    # Small shapes consistent with the module: 35 classes (torch.eye(35)).
    key = jax.random.PRNGKey(0)
    k1, k2, k3, k4, k5, k6 = jax.random.split(key, 6)
    C = 35

    # case 1: single tile; second "parallel" half is fully masked out
    N1 = 8
    logits1 = jax.random.normal(k1, (N1, C), dtype=jnp.float32)
    targets1 = jax.random.randint(k2, (N1,), 0, C, dtype=jnp.int32)
    loss1 = focal_loss(logits1, targets1, alpha=1.0, gamma=2.0)
    jax.block_until_ready(loss1)
    ref1 = focal_loss_ref(logits1, targets1, alpha=1.0, gamma=2.0)
    assert jnp.allclose(loss1, ref1, rtol=1e-4, atol=1e-6), (loss1, ref1)

    # case 2: multi-tile grid, ragged last tile + clamped duplicate tile
    N2 = 50
    logits2 = jax.random.normal(k3, (N2, C), dtype=jnp.float32) * 3.0
    targets2 = jax.random.randint(k4, (N2,), 0, C, dtype=jnp.int32)
    loss2 = focal_loss(logits2, targets2, alpha=0.25, gamma=2.0, tile_n=16)
    jax.block_until_ready(loss2)
    ref2 = focal_loss_ref(logits2, targets2, alpha=0.25, gamma=2.0)
    assert jnp.allclose(loss2, ref2, rtol=1e-4, atol=1e-6), (loss2, ref2)

    # case 3: exactly-covered grid (ragged mask not traced at all)
    N3 = 64
    logits3 = jax.random.normal(k5, (N3, C), dtype=jnp.float32)
    targets3 = jax.random.randint(k6, (N3,), 0, C, dtype=jnp.int32)
    loss3 = focal_loss(logits3, targets3, alpha=1.0, gamma=2.0, tile_n=16)
    jax.block_until_ready(loss3)
    ref3 = focal_loss_ref(logits3, targets3, alpha=1.0, gamma=2.0)
    assert jnp.allclose(loss3, ref3, rtol=1e-4, atol=1e-6), (loss3, ref3)

    # case 4: bf16 logits in HBM (in-kernel upcast path)
    logits4 = logits2.astype(jnp.bfloat16)
    loss4 = focal_loss(logits4, targets2, alpha=1.0, gamma=2.0, tile_n=16)
    jax.block_until_ready(loss4)
    ref4 = focal_loss_ref(logits4.astype(jnp.float32), targets2, alpha=1.0, gamma=2.0)
    assert jnp.allclose(loss4, ref4, rtol=1e-4, atol=1e-6), (loss4, ref4)

    print("KERNEL_OK")
</pallas_src>

<mosaic_0001>
module attributes {stable_mosaic.version = 11 : i64} {
  func.func @focal_loss_kernel(%arg0: i32, %arg1: i32, %arg2: memref<8x35xf32, #tpu.memory_space<vmem>>, %arg3: memref<8x1xi32, #tpu.memory_space<vmem>>, %arg4: memref<8x128xf32, #tpu.memory_space<vmem>>, %arg5: memref<1x1xf32, #tpu.memory_space<vmem>>) attributes {dimension_semantics = [#tpu.dimension_semantics<parallel>, #tpu.dimension_semantics<arbitrary>], iteration_bounds = array<i64: 2, 1>, scalar_prefetch = 0 : i64, scratch_operands = 1 : i64, tpu.core_type = #tpu.core_type<tc>, window_params = [{transform_indices = @transform_0, window_bounds = array<i64: 8, 35>}, {transform_indices = @transform_1, window_bounds = array<i64: 8, 1>}, {transform_indices = @transform_2, window_bounds = array<i64: 8, 128>}]} {
    %c0_i32 = arith.constant 0 : i32
    %0 = arith.cmpi eq, %arg1, %c0_i32 : i32
    %1 = arith.extui %0 : i1 to i32
    %c0_i32_0 = arith.constant 0 : i32
    %2 = arith.cmpi ne, %1, %c0_i32_0 : i32
    scf.if %2 {
      %cst_18 = arith.constant 0.000000e+00 : f32
      %44 = vector.broadcast %cst_18 : f32 to vector<1x1xf32>
      %c0_19 = arith.constant 0 : index
      %c0_20 = arith.constant 0 : index
      %45 = vector.load %arg5[%c0_19, %c0_20] : memref<1x1xf32, #tpu.memory_space<vmem>>, vector<1x1xf32>
      tpu.vector_store %arg5[%c0_19, %c0_20], %44 {strides = array<i32>} : memref<1x1xf32, #tpu.memory_space<vmem>>, vector<1x1xf32>,
    } else {
    }
    %c0 = arith.constant 0 : index
    %c0_1 = arith.constant 0 : index
    %3 = vector.load %arg2[%c0, %c0_1] : memref<8x35xf32, #tpu.memory_space<vmem>>, vector<8x35xf32>
    %c0_2 = arith.constant 0 : index
    %c0_3 = arith.constant 0 : index
    %4 = vector.load %arg3[%c0_2, %c0_3] : memref<8x1xi32, #tpu.memory_space<vmem>>, vector<8x1xi32>
    %5 = tpu.iota {dimensions = array<i32: 1>} : vector<8x35xi32>
    %6 = vector.broadcast %4 : vector<8x1xi32> to vector<8x35xi32>
    %7 = arith.cmpi eq, %5, %6 : vector<8x35xi32>
    %cst = arith.constant 0.000000e+00 : f32
    %8 = vector.broadcast %cst : f32 to vector<8x35xf32>
    %9 = arith.select %7, %3, %8 : vector<8x35xi1>, vector<8x35xf32>
    %cst_4 = arith.constant dense<0.000000e+00> : vector<8xf32>
    %10 = vector.multi_reduction <add>, %9, %cst_4 [1] : vector<8x35xf32> to vector<8xf32>
    %11 = vector.shape_cast %10 : vector<8xf32> to vector<8x1xf32>
    %cst_5 = arith.constant dense<0xFF800000> : vector<8xf32>
    %12 = vector.multi_reduction <maximumf>, %3, %cst_5 [1] : vector<8x35xf32> to vector<8xf32>
    %13 = vector.shape_cast %12 : vector<8xf32> to vector<8x1xf32>
    %14 = vector.broadcast %13 : vector<8x1xf32> to vector<8x35xf32>
    %15 = arith.subf %3, %14 : vector<8x35xf32>
    %16 = math.exp %15 : vector<8x35xf32>
    %cst_6 = arith.constant 1.000000e+00 : f32
    %17 = vector.broadcast %cst_6 : f32 to vector<35x8xf32>
    %cst_7 = arith.constant dense<0.000000e+00> : vector<8x8xf32>
    %18 = tpu.matmul %16, %17, %cst_7 {dimension_numbers = #tpu.dot_dimension_numbers<[1], [0], [0], [1], [0, 0, 1, 1], [], []>, precision = #tpu.contract_precision<fp32>} : vector<8x35xf32>, vector<35x8xf32>, vector<8x8xf32> -> vector<8x8xf32>
    %19 = vector.extract_strided_slice %18 {offsets = [0, 0], sizes = [8, 1], strides = [1, 1]} : vector<8x8xf32> to vector<8x1xf32>
    %20 = math.log %19 : vector<8x1xf32>
    %21 = arith.subf %13, %11 : vector<8x1xf32>
    %22 = arith.addf %20, %21 : vector<8x1xf32>
    %cst_8 = arith.constant 0.000000e+00 : f32
    %23 = vector.broadcast %cst_8 : f32 to vector<8x1xf32>
    %24 = arith.subf %23, %22 : vector<8x1xf32>
    %25 = math.exp %24 : vector<8x1xf32>
    %cst_9 = arith.constant 1.000000e+00 : f32
    %26 = vector.broadcast %cst_9 : f32 to vector<8x1xf32>
    %27 = arith.subf %26, %25 : vector<8x1xf32>
    %28 = arith.mulf %27, %27 : vector<8x1xf32>
    %29 = arith.mulf %28, %22 : vector<8x1xf32>
    %c1_i32 = arith.constant 1 : i32
    %30 = arith.muli %arg0, %c1_i32 : i32
    %31 = arith.addi %30, %arg1 : i32
    %c8_i32 = arith.constant 8 : i32
    %32 = arith.muli %31, %c8_i32 : i32
    %c8_i32_10 = arith.constant 8 : i32
    %33 = arith.addi %32, %c8_i32_10 : i32
    %c8_i32_11 = arith.constant 8 : i32
    %34 = arith.cmpi sle, %33, %c8_i32_11 : i32
    %35 = arith.extui %34 : i1 to i32
    %c0_i32_12 = arith.constant 0 : i32
    %36 = arith.cmpi ne, %35, %c0_i32_12 : i32
    scf.if %36 {
      %c0_18 = arith.constant 0 : index
      %c0_19 = arith.constant 0 : index
      %44 = vector.load %arg5[%c0_18, %c0_19] : memref<1x1xf32, #tpu.memory_space<vmem>>, vector<1x1xf32>
      %cst_20 = arith.constant dense<0.000000e+00> : vector<1xf32>
      %45 = vector.multi_reduction <add>, %29, %cst_20 [0] : vector<8x1xf32> to vector<1xf32>
      %46 = vector.shape_cast %45 : vector<1xf32> to vector<1x1xf32>
      %47 = arith.addf %44, %46 : vector<1x1xf32>
      %c0_21 = arith.constant 0 : index
      %c0_22 = arith.constant 0 : index
      %48 = vector.load %arg5[%c0_21, %c0_22] : memref<1x1xf32, #tpu.memory_space<vmem>>, vector<1x1xf32>
      tpu.vector_store %arg5[%c0_21, %c0_22], %47 {strides = array<i32>} : memref<1x1xf32, #tpu.memory_space<vmem>>, vector<1x1xf32>,
    } else {
    }
    %c8_i32_13 = arith.constant 8 : i32
    %37 = arith.addi %32, %c8_i32_13 : i32
    %c8_i32_14 = arith.constant 8 : i32
    %38 = arith.cmpi sgt, %37, %c8_i32_14 : i32
    %39 = arith.extui %38 : i1 to i32
    %c0_i32_15 = arith.constant 0 : i32
    %40 = arith.cmpi ne, %39, %c0_i32_15 : i32
    scf.if %40 {
      %44 = tpu.iota {dimensions = array<i32: 0>} : vector<8x1xi32>
      %45 = vector.broadcast %32 : i32 to vector<8x1xi32>
      %46 = arith.addi %44, %45 : vector<8x1xi32>
      %c8_i32_18 = arith.constant 8 : i32
      %47 = vector.broadcast %c8_i32_18 : i32 to vector<8x1xi32>
      %48 = arith.cmpi slt, %46, %47 : vector<8x1xi32>
      %cst_19 = arith.constant 0.000000e+00 : f32
      %49 = vector.broadcast %cst_19 : f32 to vector<8x1xf32>
      %50 = arith.select %48, %29, %49 : vector<8x1xi1>, vector<8x1xf32>
      %c0_20 = arith.constant 0 : index
      %c0_21 = arith.constant 0 : index
      %51 = vector.load %arg5[%c0_20, %c0_21] : memref<1x1xf32, #tpu.memory_space<vmem>>, vector<1x1xf32>
      %cst_22 = arith.constant dense<0.000000e+00> : vector<1xf32>
      %52 = vector.multi_reduction <add>, %50, %cst_22 [0] : vector<8x1xf32> to vector<1xf32>
      %53 = vector.shape_cast %52 : vector<1xf32> to vector<1x1xf32>
      %54 = arith.addf %51, %53 : vector<1x1xf32>
      %c0_23 = arith.constant 0 : index
      %c0_24 = arith.constant 0 : index
      %55 = vector.load %arg5[%c0_23, %c0_24] : memref<1x1xf32, #tpu.memory_space<vmem>>, vector<1x1xf32>
      tpu.vector_store %arg5[%c0_23, %c0_24], %54 {strides = array<i32>} : memref<1x1xf32, #tpu.memory_space<vmem>>, vector<1x1xf32>,
    } else {
    }
    %c0_i32_16 = arith.constant 0 : i32
    %41 = arith.cmpi eq, %arg1, %c0_i32_16 : i32
    %42 = arith.extui %41 : i1 to i32
    %c0_i32_17 = arith.constant 0 : i32
    %43 = arith.cmpi ne, %42, %c0_i32_17 : i32
    scf.if %43 {
      %c0_18 = arith.constant 0 : index
      %c0_19 = arith.constant 0 : index
      %44 = vector.load %arg5[%c0_18, %c0_19] : memref<1x1xf32, #tpu.memory_space<vmem>>, vector<1x1xf32>
      %cst_20 = arith.constant 1.250000e-01 : f32
      %45 = vector.broadcast %cst_20 : f32 to vector<1x1xf32>
      %46 = arith.mulf %44, %45 : vector<1x1xf32>
      %47 = vector.shape_cast %46 : vector<1x1xf32> to vector<1x1xf32>
      %48 = vector.broadcast %47 : vector<1x1xf32> to vector<8x128xf32>
      %c0_21 = arith.constant 0 : index
      %c0_22 = arith.constant 0 : index
      %49 = vector.load %arg4[%c0_21, %c0_22] : memref<8x128xf32, #tpu.memory_space<vmem>>, vector<8x128xf32>
      tpu.vector_store %arg4[%c0_21, %c0_22], %48 {strides = array<i32>} : memref<8x128xf32, #tpu.memory_space<vmem>>, vector<8x128xf32>,
    } else {
    }
    return
  }
  func.func @transform_0(%arg0: i32, %arg1: i32) -> (i32, i32) {
    %c1_i32 = arith.constant 1 : i32
    %0 = arith.muli %arg0, %c1_i32 : i32
    %1 = arith.addi %0, %arg1 : i32
    %c0_i32 = arith.constant 0 : i32
    %2 = arith.minsi %1, %c0_i32 : i32
    %c0_i32_0 = arith.constant 0 : i32
    %c0_i32_1 = arith.constant 0 : i32
    return %2, %c0_i32_0 : i32, i32
  }
  func.func @transform_1(%arg0: i32, %arg1: i32) -> (i32, i32) {
    %c1_i32 = arith.constant 1 : i32
    %0 = arith.muli %arg0, %c1_i32 : i32
    %1 = arith.addi %0, %arg1 : i32
    %c0_i32 = arith.constant 0 : i32
    %2 = arith.minsi %1, %c0_i32 : i32
    %c0_i32_0 = arith.constant 0 : i32
    %c0_i32_1 = arith.constant 0 : i32
    return %2, %c0_i32_0 : i32, i32
  }
  func.func @transform_2(%arg0: i32, %arg1: i32) -> (i32, i32) {
    %c0_i32 = arith.constant 0 : i32
    %c0_i32_0 = arith.constant 0 : i32
    return %arg0, %c0_i32 : i32, i32
  }
}

</mosaic_0001>

<llo_original>
// kernel: tpu_custom_call.1
$region0: #{tpu_custom_call.1}
  #allocation0 [shape = 'u32[]', space=smem, size = 0x4, offset = 0x4, fixed_abs, tag = 'smem constant byte address 0x4 - core index']
  #allocation1 [shape = 'u32[72,128]{1,0:T(1,128)}', space=vmem, size = 0x9000, scoped, tag = 'internal scratch']
  #allocation2 [shape = 'f32[1,1]{1,0:T(1,128)}', space=vmem, size = 0x200, scoped, tag = 'scratch operand']
  %s0 = inlined_call_operand.vmem [shape: f32[8,35], index: 0, kind: input, shape index: {}]
  %s1 = inlined_call_operand.vmem [shape: s32[8,1], index: 1, kind: input, shape index: {}]
  %s2 = inlined_call_operand.hbm [shape: f32[16,128], index: 2, kind: output, shape index: {}]
  %s3 = sld [smem:[#allocation0]]
  $region57: #{tpu_custom_call.1} parent=0
    _
  %s5 = ssub.s32 1, %s3
  %s6 = scalar_select 0, %s5, %s3
  $region1: #{tpu_custom_call.1} parent=0
    #allocation3 [shape = 'u8[8192]{0}', space=vmem, size = 0x2000, scoped, tag = 'output window, operand 0']
    #allocation4 [shape = 's32[2]{0}', space=sflag, size = 0x8, scoped, tag = 'scoped memory for tpu_custom_call.1']
    %7 = vsyncpa [#allocation4], 0
    %s8 = scalar_lea.sflag [#allocation4], 1
    %9 = vsyncpa %s8, 0
    loop: start=0, step=1, limit=4
    $region2: #{tpu_custom_call.1} parent=1 // loop_pre_header
      _
    $region3: #{tpu_custom_call.1} parent=1 // loop_header
      %s11 = sphi 0, %s15
      %p12 = scmp.ge.s32.totalorder %s11, 4
      %s18 = sphi 0, %s30
      %s19 = sphi 0, %s26
      %s20 = sphi 0, %s18
      %s21 = sphi 0, %s19
      %s22 = sphi 0, %s20
      %s23 = sphi 0, %s21
      %s39 = sphi 0, %s41
      %s42 = sphi 0, %s39
      %s43 = sphi 0, %s42
      %s59 = sphi 0, %s43
      %s71 = sphi 0, %s73
      %s74 = sphi 0, %s71
      %s75 = sphi 0, %s74
      %s91 = sphi 0, %s75
      %s97 = sphi 0, %s99
      %s100 = sphi 0, %s97
      %s101 = sphi 0, %s100
      %s117 = sphi 0, %s101
    $region4: #{tpu_custom_call.1} parent=1 // loop_header_branch
      %14 = sbr.rel (%p12) target = $region8
    $region5: #{tpu_custom_call.1} parent=1 // loop_body
      %s16 = ssub.s32 %s11, 1
      %s17 = ssub.s32 %s11, 2
      %s24 = sadd.s32 1, %s19
      %p25 = scmp.ge.s32.totalorder %s24, 1
      %s26 = scalar_select %p25, 0, %s24
      %s27 = sadd.s32 1, %s18
      %s28 = scalar_select %p25, %s27, %s18
      %p29 = scmp.ge.s32.totalorder %s28, 2
      %s30 = scalar_select %p29, 0, %s28
      %s31 = sadd.s32 %s18, %s19
      %p32 = scmp.lt.s32.totalorder %s31, 0
      %s33 = scalar_select %p32, %s31, 0
      %s34 = sadd.s32 %s30, %s26
      %p35 = scmp.lt.s32.totalorder %s34, 0
      %s36 = scalar_select %p35, %s34, 0
      %s37 = ssub.s32 %s33, %s36
      %p38 = scmp.eq.s32.totalorder %s37, 0
      %s40 = sadd.s32 %s39, 1
      %s41 = scalar_select %p38, %s39, %s40
      %p44 = pneg %p38
      %p45 = scmp.eq.s32.totalorder %s11, 1
      %p46 = por %p44, %p45
      %p47 = scmp.ne.s32.totalorder %s39, %s42
      %p48 = scmp.eq.s32.totalorder %s11, 0
      %p49 = por %p47, %p48
      %p50 = scmp.ne.s32.totalorder %s39, %s42
      %p51 = scmp.eq.s32.totalorder %s16, 1
      %p52 = por %p50, %p51
      %p53 = scmp.ne.s32.totalorder %s42, %s43
      %p54 = scmp.eq.s32.totalorder %s16, 0
      %p55 = por %p53, %p54
      %p56 = scmp.ne.s32.totalorder %s42, %s43
      %p57 = scmp.eq.s32.totalorder %s17, 1
      %p58 = por %p56, %p57
      %p60 = scmp.ne.s32.totalorder %s43, %s59
      %p61 = scmp.eq.s32.totalorder %s17, 0
      %p62 = por %p60, %p61
      %s63 = sadd.s32 %s18, %s19
      %p64 = scmp.lt.s32.totalorder %s63, 0
      %s65 = scalar_select %p64, %s63, 0
      %s66 = sadd.s32 %s30, %s26
      %p67 = scmp.lt.s32.totalorder %s66, 0
      %s68 = scalar_select %p67, %s66, 0
      %s69 = ssub.s32 %s65, %s68
      %p70 = scmp.eq.s32.totalorder %s69, 0
      %s72 = sadd.s32 %s71, 1
      %s73 = scalar_select %p70, %s71, %s72
      %p76 = pneg %p70
      %p77 = scmp.eq.s32.totalorder %s11, 1
      %p78 = por %p76, %p77
      %p79 = scmp.ne.s32.totalorder %s71, %s74
      %p80 = scmp.eq.s32.totalorder %s11, 0
      %p81 = por %p79, %p80
      %p82 = scmp.ne.s32.totalorder %s71, %s74
      %p83 = scmp.eq.s32.totalorder %s16, 1
      %p84 = por %p82, %p83
      %p85 = scmp.ne.s32.totalorder %s74, %s75
      %p86 = scmp.eq.s32.totalorder %s16, 0
      %p87 = por %p85, %p86
      %p88 = scmp.ne.s32.totalorder %s74, %s75
      %p89 = scmp.eq.s32.totalorder %s17, 1
      %p90 = por %p88, %p89
      %p92 = scmp.ne.s32.totalorder %s75, %s91
      %p93 = scmp.eq.s32.totalorder %s17, 0
      %p94 = por %p92, %p93
      %s95 = ssub.s32 %s18, %s30
      %p96 = scmp.eq.s32.totalorder %s95, 0
      %s98 = sadd.s32 %s97, 1
      %s99 = scalar_select %p96, %s97, %s98
      %p102 = pneg %p96
      %p103 = scmp.eq.s32.totalorder %s11, 1
      %p104 = por %p102, %p103
      %p105 = scmp.ne.s32.totalorder %s97, %s100
      %p106 = scmp.eq.s32.totalorder %s11, 0
      %p107 = por %p105, %p106
      %p108 = scmp.ne.s32.totalorder %s97, %s100
      %p109 = scmp.eq.s32.totalorder %s16, 1
      %p110 = por %p108, %p109
      %p111 = scmp.ne.s32.totalorder %s100, %s101
      %p112 = scmp.eq.s32.totalorder %s16, 0
      %p113 = por %p111, %p112
      %p114 = scmp.ne.s32.totalorder %s100, %s101
      %p115 = scmp.eq.s32.totalorder %s17, 1
      %p116 = por %p114, %p115
      %p118 = scmp.ne.s32.totalorder %s101, %s117
      %p119 = scmp.eq.s32.totalorder %s17, 0
      %p120 = por %p118, %p119
      %p121 = scmp.le.s32.totalorder 1, %s11
      %p122 = scmp.lt.s32.totalorder %s11, 3
      %p123 = pnand %p121, %p122
      %p124 = pneg %p123
      // Predicated region
      $region9: #{tpu_custom_call.1} parent=5 // pred_check
        _
      $region10: #{tpu_custom_call.1} parent=5 // pred_check_branch
        %126 = sbr.rel (%p123) target = $region12
      $region11: #{tpu_custom_call.1} parent=5 // pred_region
        %s127 = ssub.s32 %s11, 1
      $region12: #{tpu_custom_call.1} parent=5 // pred_fallthru
        _
      %p128 = scmp.lt.s32.totalorder %s11, 2
      // Predicated region
      $region13: #{tpu_custom_call.1} parent=5 // pred_check
        %p129 = pneg %p128
      $region14: #{tpu_custom_call.1} parent=5 // pred_check_branch
        %131 = sbr.rel (%p129) target = $region16
      $region15: #{tpu_custom_call.1} parent=5 // pred_region
        // Predicated region
        $region17: #{tpu_custom_call.1} parent=15 // pred_check
          %p132 = pneg %p49
        $region18: #{tpu_custom_call.1} parent=15 // pred_check_branch
          %134 = sbr.rel (%p132) target = $region20
        $region19: #{tpu_custom_call.1} parent=15 // pred_region
          %s135 = sadd.s32 %s18, %s19
          %p136 = scmp.lt.s32.totalorder %s135, 0
          %s137 = scalar_select %p136, %s135, 0
          %p138 = scmp.lt.s32.totalorder %s137, 0
          %s139 = scalar_select %p138, %s137, 0
          %s140 = smul.addr %s139, 8
          %s141 = scalar_lea.vmem %s0, %s140
          %s142 = sadd.s32 %s18, %s19
          %p143 = scmp.lt.s32.totalorder %s142, 0
          %s144 = scalar_select %p143, %s142, 0
        $region20: #{tpu_custom_call.1} parent=15 // pred_fallthru
          _
        // Predicated region
        $region21: #{tpu_custom_call.1} parent=15 // pred_check
          %p145 = pneg %p81
        $region22: #{tpu_custom_call.1} parent=15 // pred_check_branch
          %147 = sbr.rel (%p145) target = $region24
        $region23: #{tpu_custom_call.1} parent=15 // pred_region
          %s148 = sadd.s32 %s18, %s19
          %p149 = scmp.lt.s32.totalorder %s148, 0
          %s150 = scalar_select %p149, %s148, 0
          %p151 = scmp.lt.s32.totalorder %s150, 0
          %s152 = scalar_select %p151, %s150, 0
          %s153 = smul.addr %s152, 8
          %s154 = scalar_lea.vmem %s1, %s153
          %s155 = sadd.s32 %s18, %s19
          %p156 = scmp.lt.s32.totalorder %s155, 0
          %s157 = scalar_select %p156, %s155, 0
        $region24: #{tpu_custom_call.1} parent=15 // pred_fallthru
          _
      $region16: #{tpu_custom_call.1} parent=5 // pred_fallthru
        _
      %p158 = scmp.le.s32.totalorder 1, %s11
      %p159 = scmp.lt.s32.totalorder %s11, 3
      %p160 = pnand %p158, %p159
      %p161 = pneg %p160
      // Predicated region
      $region25: #{tpu_custom_call.1} parent=5 // pred_check
        _
      $region26: #{tpu_custom_call.1} parent=5 // pred_check_branch
        %163 = sbr.rel (%p160) target = $region28
      $region27: #{tpu_custom_call.1} parent=5 // pred_region
        %s164 = ssub.s32 %s11, 1
        %s165 = sadd.s32 %s20, %s21
        %p166 = scmp.lt.s32.totalorder %s165, 0
        %s167 = scalar_select %p166, %s165, 0
        %p168 = scmp.lt.s32.totalorder %s167, 0
        %s169 = scalar_select %p168, %s167, 0
        %s170 = smul.addr %s169, 8
        %s171 = scalar_lea.vmem %s0, %s170
        %p172 = pneg %p55
        %p173 = pneg %p52
        %s174 = sadd.s32 %s20, %s21
        %p175 = scmp.lt.s32.totalorder %s174, 0
        %s176 = scalar_select %p175, %s174, 0
        %p177 = scmp.lt.s32.totalorder %s176, 0
        %s178 = scalar_select %p177, %s176, 0
        %s179 = smul.addr %s178, 8
        %s180 = scalar_lea.vmem %s1, %s179
        %p181 = pneg %p87
        %p182 = pneg %p84
        %p183 = pneg %p113
        %p184 = pneg %p110
        %s185 = sand.u32 %s100, 1
        %s186 = scalar_lea.sflag [#allocation4], %s185
        %s187 = sand.u32 %s100, 1
        %s188 = smul.addr %s187, 8
        %s189 = scalar_lea.vmem [#allocation3], %s188
        %s190 = sadd.s32 %s20, %s21
        %p191 = scmp.lt.s32.totalorder %s190, 0
        %s192 = scalar_select %p191, %s190, 0
        %p193 = scmp.lt.s32.totalorder %s192, 0
        %s194 = scalar_select %p193, %s192, 0
        %s195 = smul.addr %s194, 8
        %s196 = scalar_lea.vmem %s0, %s195
        %s197 = sadd.s32 %s20, %s21
        %p198 = scmp.lt.s32.totalorder %s197, 0
        %s199 = scalar_select %p198, %s197, 0
        %s200 = sadd.s32 %s20, %s21
        %p201 = scmp.lt.s32.totalorder %s200, 0
        %s202 = scalar_select %p201, %s200, 0
        %p203 = scmp.lt.s32.totalorder %s202, 0
        %s204 = scalar_select %p203, %s202, 0
        %s205 = smul.addr %s204, 8
        %s206 = scalar_lea.vmem %s1, %s205
        %s207 = sadd.s32 %s20, %s21
        %p208 = scmp.lt.s32.totalorder %s207, 0
        %s209 = scalar_select %p208, %s207, 0
        %p210 = scmp.eq.s32.totalorder %s21, 0
        // Predicated region
        $region29: #{tpu_custom_call.1} parent=27 // pred_check
          %p211 = pneg %p210
        $region30: #{tpu_custom_call.1} parent=27 // pred_check_branch
          %213 = sbr.rel (%p211) target = $region32
        $region31: #{tpu_custom_call.1} parent=27 // pred_region
          %vm214 = vcmask 0
          %215 = vst.msk [vmem:[#allocation2] sm:$0x1] %vm214, 0.0
        $region32: #{tpu_custom_call.1} parent=27 // pred_fallthru
          _
        %v216 = vld [vmem:[%s196] sm:$0xff]
        %v217 = vld [vmem:[%s206] sm:$0xff]
        %v218 = vlaneseq
        %v219 = vand.u32 %v218, 127
        %220 = vset.pattern.permute.xlu0 0
        %221 = vperm.xlu0 %220, %v217
        %v222 = vpop.permute.xlu0 %221
        %vm223 = vcmp.eq.s32.totalorder %v219, %v222
        %v224 = vsel %vm223, %v216, 0.0
        %vm225 = vcmask 285696
        %v226 = vsel %vm225, %v224, 0.0
        %227 = vadd.xlane.f32.xlu0 %v226
        %v228 = vpop.xlane.xlu0 %227
        %v229 = vsel %vm225, %v216, -inf
        %230 = vmax.xlane.f32.xlu0 %v229
        %v231 = vpop.xlane.xlu0 %230
        %v232 = vsub.f32 %v216, %v231
        %v233 = vmul.f32 %v232, 1.442695
        %v234 = vpow.pop %v233
        %v236 = vsel %vm225, %v234, 0
        %vm238 = vcmask 1042432
        %v240 = vsel %vm238, 1.0, 0
        %242 = vmatpush.msra.mxu0 0.0
        %243 = vmatpush.msra.mxu0 0.0
        %244 = vmatpush.msra.mxu0 0.0
        %245 = vmatpush.msra.mxu0 0.0
        %246 = vmatpush.msra.mxu0 0.0
        %247 = vmatpush.msra.mxu0 0.0
        %248 = vmatpush.msra.mxu0 0.0
        %249 = vmatpush.msra.mxu0 0.0
        %250 = vmatpush.msra.mxu0 0.0
        %251 = vmatpush.msra.mxu0 0.0
        %252 = vmatpush.msra.mxu0 0.0
        %v253 = vand.u32 %v240, 4294901760
        %254 = vmatpush.msra.mxu0 %v253
        %255 = vmatpush.msra.mxu0 1.0
        %256 = vmatpush.msra.mxu0 1.0
        %257 = vmatpush.msra.mxu0 1.0
        %258 = vmatpush.msra.mxu0 1.0
        %v259 = vand.u32 %v236, 4294901760
        %v260 = vsub.f32 %v236, %v259
        %v261 = vand.u32 %v260, 4294901760
        %v262 = vsub.f32 %v260, %v261
        %v263 = vand.u32 %v262, 4294901760
        %264 = vmatmul.f32.gmra.mxu0 %v263
        %v265 = vpop.f32.mrf.mxu0
        %v266 = vadd.f32 0.0, %v265
        %267 = vdwg.mxu0
        %268 = vmatpush.msra.mxu0 0.0
        %269 = vmatpush.msra.mxu0 0.0
        %270 = vmatpush.msra.mxu0 0.0
        %271 = vmatpush.msra.mxu0 0.0
        %272 = vmatpush.msra.mxu0 0.0
        %273 = vmatpush.msra.mxu0 0.0
        %274 = vmatpush.msra.mxu0 0.0
        %275 = vmatpush.msra.mxu0 0.0
        %276 = vmatpush.msra.mxu0 0.0
        %277 = vmatpush.msra.mxu0 0.0
        %278 = vmatpush.msra.mxu0 0.0
        %v279 = vand.u32 %v240, 4294901760
        %v280 = vsub.f32 %v240, %v279
        %v281 = vand.u32 %v280, 4294901760
        %v282 = vsub.f32 %v280, %v281
        %v283 = vand.u32 %v282, 4294901760
        %284 = vmatpush.msra.mxu0 %v283
        %285 = vmatpush.msra.mxu0 0.0
        %286 = vmatpush.msra.mxu0 0.0
        %287 = vmatpush.msra.mxu0 0.0
        %288 = vmatpush.msra.mxu0 0.0
        %v289 = vand.u32 %v236, 4294901760
        %290 = vmatmul.f32.gmra.mxu0 %v289
        %v291 = vpop.f32.mrf.mxu0
        %v292 = vadd.f32 %v266, %v291
        %293 = vdwg.mxu0
        %294 = vmatpush.msra.mxu0 0.0
        %295 = vmatpush.msra.mxu0 0.0
        %296 = vmatpush.msra.mxu0 0.0
        %297 = vmatpush.msra.mxu0 0.0
        %298 = vmatpush.msra.mxu0 0.0
        %299 = vmatpush.msra.mxu0 0.0
        %300 = vmatpush.msra.mxu0 0.0
        %301 = vmatpush.msra.mxu0 0.0
        %302 = vmatpush.msra.mxu0 0.0
        %303 = vmatpush.msra.mxu0 0.0
        %304 = vmatpush.msra.mxu0 0.0
        %v305 = vand.u32 %v240, 4294901760
        %v306 = vsub.f32 %v240, %v305
        %307 = vmatpush.msra.mxu0 %v306
        %308 = vmatpush.msra.mxu0 0.0
        %309 = vmatpush.msra.mxu0 0.0
        %310 = vmatpush.msra.mxu0 0.0
        %311 = vmatpush.msra.mxu0 0.0
        %v312 = vand.u32 %v236, 4294901760
        %v313 = vsub.f32 %v236, %v312
        %314 = vmatmul.f32.gmra.mxu0 %v313
        %v315 = vpop.f32.mrf.mxu0
        %v316 = vadd.f32 %v292, %v315
        %317 = vdwg.mxu0
        %318 = vmatpush.msra.mxu0 0.0
        %319 = vmatpush.msra.mxu0 0.0
        %320 = vmatpush.msra.mxu0 0.0
        %321 = vmatpush.msra.mxu0 0.0
        %322 = vmatpush.msra.mxu0 0.0
        %323 = vmatpush.msra.mxu0 0.0
        %324 = vmatpush.msra.mxu0 0.0
        %325 = vmatpush.msra.mxu0 0.0
        %326 = vmatpush.msra.mxu0 0.0
        %327 = vmatpush.msra.mxu0 0.0
        %328 = vmatpush.msra.mxu0 0.0
        %v329 = vand.u32 %v240, 4294901760
        %330 = vmatpush.msra.mxu0 %v329
        %331 = vmatpush.msra.mxu0 1.0
        %332 = vmatpush.msra.mxu0 1.0
        %333 = vmatpush.msra.mxu0 1.0
        %334 = vmatpush.msra.mxu0 1.0
        %v335 = vand.u32 %v236, 4294901760
        %v336 = vsub.f32 %v236, %v335
        %v337 = vand.u32 %v336, 4294901760
        %338 = vmatmul.f32.gmra.mxu0 %v337
        %v339 = vpop.f32.mrf.mxu0
        %v340 = vadd.f32 %v316, %v339
        %341 = vdwg.mxu0
        %342 = vmatpush.msra.mxu0 0.0
        %343 = vmatpush.msra.mxu0 0.0
        %344 = vmatpush.msra.mxu0 0.0
        %345 = vmatpush.msra.mxu0 0.0
        %346 = vmatpush.msra.mxu0 0.0
        %347 = vmatpush.msra.mxu0 0.0
        %348 = vmatpush.msra.mxu0 0.0
        %349 = vmatpush.msra.mxu0 0.0
        %350 = vmatpush.msra.mxu0 0.0
        %351 = vmatpush.msra.mxu0 0.0
        %352 = vmatpush.msra.mxu0 0.0
        %v353 = vand.u32 %v240, 4294901760
        %v354 = vsub.f32 %v240, %v353
        %v355 = vand.u32 %v354, 4294901760
        %356 = vmatpush.msra.mxu0 %v355
        %357 = vmatpush.msra.mxu0 0.0
        %358 = vmatpush.msra.mxu0 0.0
        %359 = vmatpush.msra.mxu0 0.0
        %360 = vmatpush.msra.mxu0 0.0
        %v361 = vand.u32 %v236, 4294901760
        %362 = vmatmul.f32.gmra.mxu0 %v361
        %v363 = vpop.f32.mrf.mxu0
        %v364 = vadd.f32 %v340, %v363
        %365 = vdwg.mxu0
        %366 = vmatpush.msra.mxu0 0.0
        %367 = vmatpush.msra.mxu0 0.0
        %368 = vmatpush.msra.mxu0 0.0
        %369 = vmatpush.msra.mxu0 0.0
        %370 = vmatpush.msra.mxu0 0.0
        %371 = vmatpush.msra.mxu0 0.0
        %372 = vmatpush.msra.mxu0 0.0
        %373 = vmatpush.msra.mxu0 0.0
        %374 = vmatpush.msra.mxu0 0.0
        %375 = vmatpush.msra.mxu0 0.0
        %376 = vmatpush.msra.mxu0 0.0
        %v377 = vand.u32 %v240, 4294901760
        %378 = vmatpush.msra.mxu0 %v377
        %379 = vmatpush.msra.mxu0 1.0
        %380 = vmatpush.msra.mxu0 1.0
        %381 = vmatpush.msra.mxu0 1.0
        %382 = vmatpush.msra.mxu0 1.0
        %v383 = vand.u32 %v236, 4294901760
        %384 = vmatmul.f32.gmra.mxu0 %v383
        %v385 = vpop.f32.mrf.mxu0
        %v386 = vadd.f32 %v364, %v385
        %387 = vdwg.mxu0
        %v388 = vlog2.pop %v386
        %v389 = vmul.f32 %v388, 0.6931472
        %v390 = vsub.f32 %v231, %v228
        %v391 = vadd.f32 %v389, %v390
        %v392 = vsub.f32 0.0, %v391
        %v393 = vmul.f32 %v392, 1.442695
        %v394 = vpow.pop %v393
        %v395 = vsub.f32 1.0, %v394
        %v396 = vmul.f32 %v395, %v395
        %v397 = vmul.f32 %v396, %v391
        %s398 = sadd.s32 %s20, %s21
        %s399 = smul.u32 %s398, 8
        %s400 = sadd.s32 %s399, 8
        %p401 = scmp.le.s32.totalorder %s400, 8
        // Predicated region
        $region33: #{tpu_custom_call.1} parent=27 // pred_check
          %p402 = pneg %p401
        $region34: #{tpu_custom_call.1} parent=27 // pred_check_branch
          %404 = sbr.rel (%p402) target = $region36
        $region35: #{tpu_custom_call.1} parent=27 // pred_region
          %v405 = vld [vmem:[#allocation2] sm:$0x1]
          %vm406 = vcmask 7168
          %v407 = vsel %vm406, %v397, 0.0
          %v408 = vrot.slane %v407, 4
          %v409 = vadd.f32 %v407, %v408
          %v410 = vrot.slane %v409, 2
          %v411 = vadd.f32 %v409, %v410
          %v412 = vrot.slane %v411, 1
          %v413 = vadd.f32 %v411, %v412
          %v414 = vadd.f32 %v405, %v413
          %vm415 = vcmask 0
          %416 = vst.msk [vmem:[#allocation2] sm:$0x1] %vm415, %v414
        $region36: #{tpu_custom_call.1} parent=27 // pred_fallthru
          _
        %p417 = scmp.gt.s32.totalorder %s400, 8
        // Predicated region
        $region37: #{tpu_custom_call.1} parent=27 // pred_check
          %p418 = pneg %p417
        $region38: #{tpu_custom_call.1} parent=27 // pred_check_branch
          %420 = sbr.rel (%p418) target = $region40
        $region39: #{tpu_custom_call.1} parent=27 // pred_region
          %v421 = vlaneseq
          %v422 = vshrl.u32 %v421, 7
          %v423 = vstv %s399
          %v424 = vadd.s32 %v422, %v423
          %vm425 = vcmp.lt.s32.totalorder %v424, 8
          %v426 = vsel %vm425, %v397, 0.0
          %v427 = vld [vmem:[#allocation2] sm:$0x1]
          %vm428 = vcmask 7168
          %v429 = vsel %vm428, %v426, 0.0
          %v430 = vrot.slane %v429, 4
          %v431 = vadd.f32 %v429, %v430
          %v432 = vrot.slane %v431, 2
          %v433 = vadd.f32 %v431, %v432
          %v434 = vrot.slane %v433, 1
          %v435 = vadd.f32 %v433, %v434
          %v436 = vadd.f32 %v427, %v435
          %vm437 = vcmask 0
          %438 = vst.msk [vmem:[#allocation2] sm:$0x1] %vm437, %v436
        $region40: #{tpu_custom_call.1} parent=27 // pred_fallthru
          _
        // Predicated region
        $region41: #{tpu_custom_call.1} parent=27 // pred_check
          %p439 = pneg %p210
        $region42: #{tpu_custom_call.1} parent=27 // pred_check_branch
          %441 = sbr.rel (%p439) target = $region44
        $region43: #{tpu_custom_call.1} parent=27 // pred_region
          %v442 = vld [vmem:[#allocation2] sm:$0x1]
          %v443 = vmul.f32 %v442, 0.125
          %v445 = vperm.slane %v443, 0
          %446 = vset.pattern.permute.xlu0 0
          %447 = vperm.xlu0 %446, %v445
          %v448 = vpop.permute.xlu0 %447
          %450 = vst [vmem:[%s189] sm:$0xff] %v448
        $region44: #{tpu_custom_call.1} parent=27 // pred_fallthru
          _
        %s451 = sand.u32 %s100, 1
        %s452 = scalar_lea.sflag [#allocation4], %s451
        %s453 = sand.u32 %s100, 1
        %s454 = smul.addr %s453, 8
        %s455 = scalar_lea.vmem [#allocation3], %s454
        // Predicated region
        $region45: #{tpu_custom_call.1} parent=27 // pred_check
          %p456 = pneg %p110
        $region46: #{tpu_custom_call.1} parent=27 // pred_check_branch
          %458 = sbr.rel (%p456) target = $region48
        $region47: #{tpu_custom_call.1} parent=27 // pred_region
          %460 = vsyncadd %s452, 0
          %s461 = smul.addr %s20, 8
          %s462 = scalar_lea.hbm %s2, %s461
          %s464 = sshll.u32 %s455, 4
          %s465 = int_to_ptr.vmem [resolvable:$true] %s464
          %s466 = sshll.u32 %s462, 4
          %s467 = int_to_ptr.hbm [resolvable:$true] %s466
          %469 = dma.vmem_to_hbm [thread:$0]  %s465, 128, %s467, %s452
        $region48: #{tpu_custom_call.1} parent=27 // pred_fallthru
          _
      $region28: #{tpu_custom_call.1} parent=5 // pred_fallthru
        _
      %p470 = scmp.le.s32.totalorder 2, %s11
      // Predicated region
      $region49: #{tpu_custom_call.1} parent=5 // pred_check
        %p471 = pneg %p470
      $region50: #{tpu_custom_call.1} parent=5 // pred_check_branch
        %473 = sbr.rel (%p471) target = $region52
      $region51: #{tpu_custom_call.1} parent=5 // pred_region
        %s474 = ssub.s32 %s11, 2
        // Predicated region
        $region53: #{tpu_custom_call.1} parent=51 // pred_check
          %p475 = pneg %p116
        $region54: #{tpu_custom_call.1} parent=51 // pred_check_branch
          %477 = sbr.rel (%p475) target = $region56
        $region55: #{tpu_custom_call.1} parent=51 // pred_region
          %s478 = sand.u32 %s101, 1
          %s479 = scalar_lea.sflag [#allocation4], %s478
          %s480 = sand.u32 %s101, 1
          %s481 = smul.addr %s480, 8
          %s482 = scalar_lea.vmem [#allocation3], %s481
          %484 = dma.done %s479, 128
        $region56: #{tpu_custom_call.1} parent=51 // pred_fallthru
          _
      $region52: #{tpu_custom_call.1} parent=5 // pred_fallthru
        _
    $region6: #{tpu_custom_call.1} parent=1 // loop_footer
      %s15 = sadd.s32 1, %s11
    $region7: #{tpu_custom_call.1} parent=1 // loop_footer_branch
      %10 = sbr.rel target = $region3
    $region8: #{tpu_custom_call.1} parent=1 // loop_exit
      _
    %485 = vsyncpa [#allocation4], 1
    %s486 = scalar_lea.sflag [#allocation4], 1
    %487 = vsyncpa %s486, 1

</llo_original>
